<compile_context>
chip_gen: v7x
topology: tpu7x:2x2x1
jax: 0.10.0
libtpu: 0.0.40
codegen_flags: <defaults>
</compile_context>

<pallas_src>
import math

import jax
import jax.numpy as jnp
import numpy as np
from jax.experimental import pallas as pl
from jax.experimental.pallas import tpu as pltpu


# ----------------------------------------------------------------------------
# Fused kernel: position MLP + multi-head attention + grouped 1x1 conv.
# ----------------------------------------------------------------------------
def _make_fused_kernel(*, N, D, group, d_q, d_o, scale):
    dgq = d_q // group

    def kernel(pos_ref, w1bd_ref, b1_ref, w2sc_ref, b2_ref,
               roi_ref, wqk_ref, bqk_ref, wcbd_ref, bc_ref, out_ref):
        f32 = jnp.float32

        # --- position MLP (fused): aff_weight for all (i, g, j) -------------
        # pos_ref is [N, N*E]; block-diagonal fc1 + scatter fc2 produce
        # w_all[i, g*N + j] == aff_weight[i, g, j] without any relayout.
        h = jnp.tanh(
            jnp.dot(pos_ref[...], w1bd_ref[...], preferred_element_type=f32)
            + b1_ref[...]
        )                                                          # [N, N*E]
        w_all = (
            jnp.dot(h, w2sc_ref[...], preferred_element_type=f32) + b2_ref[...]
        )                                                          # [N, group*N]

        # --- Q/K projections for all heads in one lane-dense matmul ---------
        roi = roi_ref[...]                                         # [N, D]
        qk = (
            jnp.dot(roi, wqk_ref[...], preferred_element_type=f32) + bqk_ref[...]
        )                                                          # [N, d_q + d_k]

        # --- per-head attention, static unroll (group is tiny) --------------
        o_parts = []
        for g in range(group):
            qg = qk[:, g * dgq:(g + 1) * dgq]                      # [N, dgq]
            kg = qk[:, d_q + g * dgq: d_q + (g + 1) * dgq]         # [N, dgq]
            # q_g @ k_g^T without materializing a transpose
            aff = jax.lax.dot_general(
                qg, kg, (((1,), (1,)), ((), ())),
                preferred_element_type=f32) * scale                # [N, N]
            wa = w_all[:, g * N:(g + 1) * N] * aff                 # fST0 weighting
            wa = wa - jnp.max(wa, axis=-1, keepdims=True)
            e = jnp.exp(wa)
            p = e * pl.reciprocal(jnp.sum(e, axis=-1, keepdims=True),
                                  approx=False)                    # softmax (dim=2)
            # Dropout(0.3): identity in eval / inference mode.
            o_parts.append(jnp.dot(p, roi, preferred_element_type=f32))  # [N, D]

        # --- grouped 1x1 conv as one block-diagonal matmul -------------------
        o_all = jnp.concatenate(o_parts, axis=1)                   # [N, group*D]
        out_ref[...] = (
            jnp.dot(o_all, wcbd_ref[...], preferred_element_type=f32)
            + bc_ref[...]
        )                                                          # single [N, d_o] store

    return kernel


# ----------------------------------------------------------------------------
# One-time host-side parameter packing (pure glue, done once per model).
# ----------------------------------------------------------------------------
def pack_params(params, N, D, E, group, dim):
    d_q, d_k, d_o = dim
    dgo = d_o // group
    p = {k: np.asarray(v, np.float32) for k, v in params.items()}

    # Block-diagonal fc1 acting on the [N, N*E] layout of position embeddings.
    w1bd = np.zeros((N * E, N * E), np.float32)
    for j in range(N):
        w1bd[j * E:(j + 1) * E, j * E:(j + 1) * E] = p["w1"].T
    b1rep = np.tile(p["b1"][None, :], (1, N))                      # [1, N*E]

    # Scatter fc2 so that (h @ w2sc)[i, g*N + j] = sum_e h[i, j*E+e] * w2[g, e].
    w2sc = np.zeros((N * E, group * N), np.float32)
    for j in range(N):
        for g in range(group):
            w2sc[j * E:(j + 1) * E, g * N + j] = p["w2"][g, :]
    b2exp = np.repeat(p["b2"][:, None], N, axis=1).reshape(1, group * N)

    # Fused, pre-transposed Q/K projection: roi @ wqk_t -> [N, d_q + d_k].
    wqk_t = np.concatenate([p["wq"], p["wk"]], axis=0).T           # [D, d_q+d_k]
    bqk = np.concatenate([p["bq"], p["bk"]], axis=0)[None, :]      # [1, d_q+d_k]

    # Block-diagonal grouped 1x1 conv (pre-transposed): rows g*D..(g+1)*D feed
    # output columns g*dgo..(g+1)*dgo.
    wcbd = np.zeros((group * D, d_o), np.float32)
    for g in range(group):
        wcbd[g * D:(g + 1) * D, g * dgo:(g + 1) * dgo] = \
            p["wc"][g * dgo:(g + 1) * dgo, :].T
    bc = p["bc"][None, :]

    packed = dict(w1bd=w1bd, b1rep=b1rep, w2sc=w2sc, b2exp=b2exp,
                  wqk_t=wqk_t, bqk=bqk, wcbd=wcbd, bc=bc)
    return {k: jnp.asarray(v) for k, v in packed.items()}


# ----------------------------------------------------------------------------
# Wrapper: one pallas_call, single grid step, whole arrays resident in VMEM.
# ----------------------------------------------------------------------------
def attention_multi_head_forward(roi_feat, position_embedding, packed,
                                 group, dim):
    N, D = roi_feat.shape
    E = position_embedding.shape[-1]
    d_q, d_k, d_o = dim
    assert d_q == d_k, "Matrix multiply requires same dimensions!"
    scale = 1.0 / math.sqrt(float(d_k // group))

    pos2d = position_embedding.reshape(N, N * E)   # contiguous reshape (free)

    kernel = _make_fused_kernel(N=N, D=D, group=group, d_q=d_q, d_o=d_o,
                                scale=scale)

    return pl.pallas_call(
        kernel,
        out_shape=jax.ShapeDtypeStruct((N, d_o), jnp.float32),
        grid=(1,),
        in_specs=[
            pl.BlockSpec((N, N * E), lambda i: (0, 0)),            # pos [N, N*E]
            pl.BlockSpec((N * E, N * E), lambda i: (0, 0)),        # fc1 block-diag
            pl.BlockSpec((1, N * E), lambda i: (0, 0)),            # fc1 bias (tiled)
            pl.BlockSpec((N * E, group * N), lambda i: (0, 0)),    # fc2 scatter
            pl.BlockSpec((1, group * N), lambda i: (0, 0)),        # fc2 bias (expanded)
            pl.BlockSpec((N, D), lambda i: (0, 0)),                # roi_feat (v_data)
            pl.BlockSpec((D, d_q + d_k), lambda i: (0, 0)),        # [Wq;Wk]^T
            pl.BlockSpec((1, d_q + d_k), lambda i: (0, 0)),        # [bq;bk]
            pl.BlockSpec((group * D, d_o), lambda i: (0, 0)),      # conv block-diag^T
            pl.BlockSpec((1, d_o), lambda i: (0, 0)),              # conv bias
        ],
        out_specs=pl.BlockSpec((N, d_o), lambda i: (0, 0)),
        compiler_params=pltpu.CompilerParams(
            dimension_semantics=("arbitrary",)),
    )(
        pos2d,
        packed["w1bd"], packed["b1rep"], packed["w2sc"], packed["b2exp"],
        roi_feat,
        packed["wqk_t"], packed["bqk"], packed["wcbd"], packed["bc"],
    )


# ----------------------------------------------------------------------------
# Pure numpy reference (mirrors the PyTorch forward, eval-mode dropout)
# ----------------------------------------------------------------------------
def reference_forward(roi, pos, p, group, dim):
    N, D = roi.shape
    d_q, d_k, d_o = dim
    dgq, dgo = d_q // group, d_o // group
    E = pos.shape[-1]

    pos_flat = pos.reshape(-1, E)
    h = np.tanh(pos_flat @ p["w1"].T + p["b1"])
    s = h @ p["w2"].T + p["b2"]
    aff_weight = s.reshape(N, N, group).transpose(0, 2, 1)          # [i, g, j]

    q = (roi @ p["wq"].T + p["bq"]).reshape(N, group, dgq).transpose(1, 0, 2)
    k = (roi @ p["wk"].T + p["bk"]).reshape(N, group, dgq).transpose(1, 0, 2)
    aff = np.einsum("gik,gjk->gij", q, k)
    aff_scale = (1.0 / math.sqrt(d_k / group) * aff).transpose(1, 0, 2)

    wa = aff_weight * aff_scale                                     # fST0
    wa = wa - wa.max(-1, keepdims=True)
    e = np.exp(wa)
    soft = e / e.sum(-1, keepdims=True)

    out_t = (soft.reshape(N * group, N) @ roi).reshape(N, group * D)
    out = np.zeros((N, d_o), dtype=np.float64)
    for g in range(group):
        wc_g = p["wc"][g * dgo:(g + 1) * dgo, :]
        out[:, g * dgo:(g + 1) * dgo] = (
            out_t[:, g * D:(g + 1) * D] @ wc_g.T + p["bc"][g * dgo:(g + 1) * dgo]
        )
    return out


if __name__ == "__main__":
    # Small, consistent shapes:
    N = 8                 # num_rois
    D = 32                # roi_emb_dim
    E = 16                # pos_emb_dim
    GROUP = 4
    DIM = (64, 64, 64)    # (d_q, d_k, d_o)

    key = jax.random.PRNGKey(0)
    keys = jax.random.split(key, 12)

    roi_feat = jax.random.normal(keys[0], (N, D), jnp.float32) * 0.5
    position_embedding = jax.random.normal(keys[1], (N, N, E), jnp.float32) * 0.5

    def init(k, shape, s=0.1):
        return jax.random.normal(k, shape, jnp.float32) * s

    params = {
        "w1": init(keys[2], (E, E)),           # pair_pos_fc1
        "b1": init(keys[3], (E,)),
        "w2": init(keys[4], (GROUP, E)),       # pair_pos_fc2
        "b2": init(keys[5], (GROUP,)),
        "wq": init(keys[6], (DIM[0], D)),      # query_1
        "bq": init(keys[7], (DIM[0],)),
        "wk": init(keys[8], (DIM[1], D)),      # key_1
        "bk": init(keys[9], (DIM[1],)),
        "wc": init(keys[10], (DIM[2], D)),     # linear_out_1 (grouped 1x1 conv), squeezed
        "bc": init(keys[11], (DIM[2],)),
    }

    packed = pack_params(params, N, D, E, GROUP, DIM)

    out = attention_multi_head_forward(roi_feat, position_embedding, packed,
                                       GROUP, DIM)
    out = jax.block_until_ready(out)

    ref = reference_forward(
        np.asarray(roi_feat, np.float64),
        np.asarray(position_embedding, np.float64),
        {k: np.asarray(v, np.float64) for k, v in params.items()},
        GROUP, DIM,
    )
    np.testing.assert_allclose(np.asarray(out), ref, rtol=1e-3, atol=1e-3)

    print("KERNEL_OK")
</pallas_src>

<mosaic_0001>
module attributes {stable_mosaic.version = 11 : i64} {
  func.func @kernel(%arg0: i32, %arg1: memref<8x128xf32, #tpu.memory_space<vmem>>, %arg2: memref<128x128xf32, #tpu.memory_space<vmem>>, %arg3: memref<1x128xf32, #tpu.memory_space<vmem>>, %arg4: memref<128x32xf32, #tpu.memory_space<vmem>>, %arg5: memref<1x32xf32, #tpu.memory_space<vmem>>, %arg6: memref<8x32xf32, #tpu.memory_space<vmem>>, %arg7: memref<32x128xf32, #tpu.memory_space<vmem>>, %arg8: memref<1x128xf32, #tpu.memory_space<vmem>>, %arg9: memref<128x64xf32, #tpu.memory_space<vmem>>, %arg10: memref<1x64xf32, #tpu.memory_space<vmem>>, %arg11: memref<8x64xf32, #tpu.memory_space<vmem>>) attributes {dimension_semantics = [#tpu.dimension_semantics<arbitrary>], iteration_bounds = array<i64: 1>, scalar_prefetch = 0 : i64, scratch_operands = 0 : i64, tpu.core_type = #tpu.core_type<tc>, window_params = [{pipeline_mode = #tpu.pipeline_mode<synchronous>, transform_indices = @transform_0, window_bounds = array<i64: 8, 128>}, {pipeline_mode = #tpu.pipeline_mode<synchronous>, transform_indices = @transform_1, window_bounds = array<i64: 128, 128>}, {pipeline_mode = #tpu.pipeline_mode<synchronous>, transform_indices = @transform_2, window_bounds = array<i64: 1, 128>}, {pipeline_mode = #tpu.pipeline_mode<synchronous>, transform_indices = @transform_3, window_bounds = array<i64: 128, 32>}, {pipeline_mode = #tpu.pipeline_mode<synchronous>, transform_indices = @transform_4, window_bounds = array<i64: 1, 32>}, {pipeline_mode = #tpu.pipeline_mode<synchronous>, transform_indices = @transform_5, window_bounds = array<i64: 8, 32>}, {pipeline_mode = #tpu.pipeline_mode<synchronous>, transform_indices = @transform_6, window_bounds = array<i64: 32, 128>}, {pipeline_mode = #tpu.pipeline_mode<synchronous>, transform_indices = @transform_7, window_bounds = array<i64: 1, 128>}, {pipeline_mode = #tpu.pipeline_mode<synchronous>, transform_indices = @transform_8, window_bounds = array<i64: 128, 64>}, {pipeline_mode = #tpu.pipeline_mode<synchronous>, transform_indices = @transform_9, window_bounds = array<i64: 1, 64>}, {pipeline_mode = #tpu.pipeline_mode<synchronous>, transform_indices = @transform_10, window_bounds = array<i64: 8, 64>}]} {
    %c0 = arith.constant 0 : index
    %c0_0 = arith.constant 0 : index
    %0 = vector.load %arg1[%c0, %c0_0] : memref<8x128xf32, #tpu.memory_space<vmem>>, vector<8x128xf32>
    %c0_1 = arith.constant 0 : index
    %c0_2 = arith.constant 0 : index
    %1 = vector.load %arg2[%c0_1, %c0_2] : memref<128x128xf32, #tpu.memory_space<vmem>>, vector<128x128xf32>
    %cst = arith.constant dense<0.000000e+00> : vector<8x128xf32>
    %2 = tpu.matmul %0, %1, %cst {dimension_numbers = #tpu.dot_dimension_numbers<[1], [0], [0], [1], [0, 0, 1, 1], [], []>} : vector<8x128xf32>, vector<128x128xf32>, vector<8x128xf32> -> vector<8x128xf32>
    %c0_3 = arith.constant 0 : index
    %c0_4 = arith.constant 0 : index
    %3 = vector.load %arg3[%c0_3, %c0_4] : memref<1x128xf32, #tpu.memory_space<vmem>>, vector<1x128xf32>
    %4 = vector.broadcast %3 : vector<1x128xf32> to vector<8x128xf32>
    %5 = arith.addf %2, %4 : vector<8x128xf32>
    %6 = math.tanh %5 : vector<8x128xf32>
    %c0_5 = arith.constant 0 : index
    %c0_6 = arith.constant 0 : index
    %7 = vector.load %arg4[%c0_5, %c0_6] : memref<128x32xf32, #tpu.memory_space<vmem>>, vector<128x32xf32>
    %cst_7 = arith.constant dense<0.000000e+00> : vector<8x32xf32>
    %8 = tpu.matmul %6, %7, %cst_7 {dimension_numbers = #tpu.dot_dimension_numbers<[1], [0], [0], [1], [0, 0, 1, 1], [], []>} : vector<8x128xf32>, vector<128x32xf32>, vector<8x32xf32> -> vector<8x32xf32>
    %c0_8 = arith.constant 0 : index
    %c0_9 = arith.constant 0 : index
    %9 = vector.load %arg5[%c0_8, %c0_9] : memref<1x32xf32, #tpu.memory_space<vmem>>, vector<1x32xf32>
    %10 = vector.broadcast %9 : vector<1x32xf32> to vector<8x32xf32>
    %11 = arith.addf %8, %10 : vector<8x32xf32>
    %c0_10 = arith.constant 0 : index
    %c0_11 = arith.constant 0 : index
    %12 = vector.load %arg6[%c0_10, %c0_11] : memref<8x32xf32, #tpu.memory_space<vmem>>, vector<8x32xf32>
    %c0_12 = arith.constant 0 : index
    %c0_13 = arith.constant 0 : index
    %13 = vector.load %arg7[%c0_12, %c0_13] : memref<32x128xf32, #tpu.memory_space<vmem>>, vector<32x128xf32>
    %cst_14 = arith.constant dense<0.000000e+00> : vector<8x128xf32>
    %14 = tpu.matmul %12, %13, %cst_14 {dimension_numbers = #tpu.dot_dimension_numbers<[1], [0], [0], [1], [0, 0, 1, 1], [], []>} : vector<8x32xf32>, vector<32x128xf32>, vector<8x128xf32> -> vector<8x128xf32>
    %c0_15 = arith.constant 0 : index
    %c0_16 = arith.constant 0 : index
    %15 = vector.load %arg8[%c0_15, %c0_16] : memref<1x128xf32, #tpu.memory_space<vmem>>, vector<1x128xf32>
    %16 = vector.broadcast %15 : vector<1x128xf32> to vector<8x128xf32>
    %17 = arith.addf %14, %16 : vector<8x128xf32>
    %18 = vector.extract_strided_slice %17 {offsets = [0, 0], sizes = [8, 16], strides = [1, 1]} : vector<8x128xf32> to vector<8x16xf32>
    %19 = vector.extract_strided_slice %17 {offsets = [0, 64], sizes = [8, 16], strides = [1, 1]} : vector<8x128xf32> to vector<8x16xf32>
    %cst_17 = arith.constant dense<0.000000e+00> : vector<8x8xf32>
    %20 = tpu.matmul %18, %19, %cst_17 {dimension_numbers = #tpu.dot_dimension_numbers<[1], [1], [0], [0], [0, 0, 1, 0], [], []>} : vector<8x16xf32>, vector<8x16xf32>, vector<8x8xf32> -> vector<8x8xf32>
    %cst_18 = arith.constant 2.500000e-01 : f32
    %21 = vector.broadcast %cst_18 : f32 to vector<8x8xf32>
    %22 = arith.mulf %20, %21 : vector<8x8xf32>
    %23 = vector.extract_strided_slice %11 {offsets = [0, 0], sizes = [8, 8], strides = [1, 1]} : vector<8x32xf32> to vector<8x8xf32>
    %24 = arith.mulf %23, %22 : vector<8x8xf32>
    %cst_19 = arith.constant dense<0xFF800000> : vector<8xf32>
    %25 = vector.multi_reduction <maximumf>, %24, %cst_19 [1] : vector<8x8xf32> to vector<8xf32>
    %26 = vector.shape_cast %25 : vector<8xf32> to vector<8x1xf32>
    %27 = vector.broadcast %26 : vector<8x1xf32> to vector<8x8xf32>
    %28 = arith.subf %24, %27 : vector<8x8xf32>
    %29 = math.exp %28 : vector<8x8xf32>
    %cst_20 = arith.constant dense<0.000000e+00> : vector<8xf32>
    %30 = vector.multi_reduction <add>, %29, %cst_20 [1] : vector<8x8xf32> to vector<8xf32>
    %31 = vector.shape_cast %30 : vector<8xf32> to vector<8x1xf32>
    %32 = tpu.reciprocal %31 : vector<8x1xf32> -> vector<8x1xf32>
    %33 = vector.broadcast %32 : vector<8x1xf32> to vector<8x8xf32>
    %34 = arith.mulf %29, %33 : vector<8x8xf32>
    %cst_21 = arith.constant dense<0.000000e+00> : vector<8x32xf32>
    %35 = tpu.matmul %34, %12, %cst_21 {dimension_numbers = #tpu.dot_dimension_numbers<[1], [0], [0], [1], [0, 0, 1, 1], [], []>} : vector<8x8xf32>, vector<8x32xf32>, vector<8x32xf32> -> vector<8x32xf32>
    %36 = vector.extract_strided_slice %17 {offsets = [0, 16], sizes = [8, 16], strides = [1, 1]} : vector<8x128xf32> to vector<8x16xf32>
    %37 = vector.extract_strided_slice %17 {offsets = [0, 80], sizes = [8, 16], strides = [1, 1]} : vector<8x128xf32> to vector<8x16xf32>
    %cst_22 = arith.constant dense<0.000000e+00> : vector<8x8xf32>
    %38 = tpu.matmul %36, %37, %cst_22 {dimension_numbers = #tpu.dot_dimension_numbers<[1], [1], [0], [0], [0, 0, 1, 0], [], []>} : vector<8x16xf32>, vector<8x16xf32>, vector<8x8xf32> -> vector<8x8xf32>
    %cst_23 = arith.constant 2.500000e-01 : f32
    %39 = vector.broadcast %cst_23 : f32 to vector<8x8xf32>
    %40 = arith.mulf %38, %39 : vector<8x8xf32>
    %41 = vector.extract_strided_slice %11 {offsets = [0, 8], sizes = [8, 8], strides = [1, 1]} : vector<8x32xf32> to vector<8x8xf32>
    %42 = arith.mulf %41, %40 : vector<8x8xf32>
    %cst_24 = arith.constant dense<0xFF800000> : vector<8xf32>
    %43 = vector.multi_reduction <maximumf>, %42, %cst_24 [1] : vector<8x8xf32> to vector<8xf32>
    %44 = vector.shape_cast %43 : vector<8xf32> to vector<8x1xf32>
    %45 = vector.broadcast %44 : vector<8x1xf32> to vector<8x8xf32>
    %46 = arith.subf %42, %45 : vector<8x8xf32>
    %47 = math.exp %46 : vector<8x8xf32>
    %cst_25 = arith.constant dense<0.000000e+00> : vector<8xf32>
    %48 = vector.multi_reduction <add>, %47, %cst_25 [1] : vector<8x8xf32> to vector<8xf32>
    %49 = vector.shape_cast %48 : vector<8xf32> to vector<8x1xf32>
    %50 = tpu.reciprocal %49 : vector<8x1xf32> -> vector<8x1xf32>
    %51 = vector.broadcast %50 : vector<8x1xf32> to vector<8x8xf32>
    %52 = arith.mulf %47, %51 : vector<8x8xf32>
    %cst_26 = arith.constant dense<0.000000e+00> : vector<8x32xf32>
    %53 = tpu.matmul %52, %12, %cst_26 {dimension_numbers = #tpu.dot_dimension_numbers<[1], [0], [0], [1], [0, 0, 1, 1], [], []>} : vector<8x8xf32>, vector<8x32xf32>, vector<8x32xf32> -> vector<8x32xf32>
    %54 = vector.extract_strided_slice %17 {offsets = [0, 32], sizes = [8, 16], strides = [1, 1]} : vector<8x128xf32> to vector<8x16xf32>
    %55 = vector.extract_strided_slice %17 {offsets = [0, 96], sizes = [8, 16], strides = [1, 1]} : vector<8x128xf32> to vector<8x16xf32>
    %cst_27 = arith.constant dense<0.000000e+00> : vector<8x8xf32>
    %56 = tpu.matmul %54, %55, %cst_27 {dimension_numbers = #tpu.dot_dimension_numbers<[1], [1], [0], [0], [0, 0, 1, 0], [], []>} : vector<8x16xf32>, vector<8x16xf32>, vector<8x8xf32> -> vector<8x8xf32>
    %cst_28 = arith.constant 2.500000e-01 : f32
    %57 = vector.broadcast %cst_28 : f32 to vector<8x8xf32>
    %58 = arith.mulf %56, %57 : vector<8x8xf32>
    %59 = vector.extract_strided_slice %11 {offsets = [0, 16], sizes = [8, 8], strides = [1, 1]} : vector<8x32xf32> to vector<8x8xf32>
    %60 = arith.mulf %59, %58 : vector<8x8xf32>
    %cst_29 = arith.constant dense<0xFF800000> : vector<8xf32>
    %61 = vector.multi_reduction <maximumf>, %60, %cst_29 [1] : vector<8x8xf32> to vector<8xf32>
    %62 = vector.shape_cast %61 : vector<8xf32> to vector<8x1xf32>
    %63 = vector.broadcast %62 : vector<8x1xf32> to vector<8x8xf32>
    %64 = arith.subf %60, %63 : vector<8x8xf32>
    %65 = math.exp %64 : vector<8x8xf32>
    %cst_30 = arith.constant dense<0.000000e+00> : vector<8xf32>
    %66 = vector.multi_reduction <add>, %65, %cst_30 [1] : vector<8x8xf32> to vector<8xf32>
    %67 = vector.shape_cast %66 : vector<8xf32> to vector<8x1xf32>
    %68 = tpu.reciprocal %67 : vector<8x1xf32> -> vector<8x1xf32>
    %69 = vector.broadcast %68 : vector<8x1xf32> to vector<8x8xf32>
    %70 = arith.mulf %65, %69 : vector<8x8xf32>
    %cst_31 = arith.constant dense<0.000000e+00> : vector<8x32xf32>
    %71 = tpu.matmul %70, %12, %cst_31 {dimension_numbers = #tpu.dot_dimension_numbers<[1], [0], [0], [1], [0, 0, 1, 1], [], []>} : vector<8x8xf32>, vector<8x32xf32>, vector<8x32xf32> -> vector<8x32xf32>
    %72 = vector.extract_strided_slice %17 {offsets = [0, 48], sizes = [8, 16], strides = [1, 1]} : vector<8x128xf32> to vector<8x16xf32>
    %73 = vector.extract_strided_slice %17 {offsets = [0, 112], sizes = [8, 16], strides = [1, 1]} : vector<8x128xf32> to vector<8x16xf32>
    %cst_32 = arith.constant dense<0.000000e+00> : vector<8x8xf32>
    %74 = tpu.matmul %72, %73, %cst_32 {dimension_numbers = #tpu.dot_dimension_numbers<[1], [1], [0], [0], [0, 0, 1, 0], [], []>} : vector<8x16xf32>, vector<8x16xf32>, vector<8x8xf32> -> vector<8x8xf32>
    %cst_33 = arith.constant 2.500000e-01 : f32
    %75 = vector.broadcast %cst_33 : f32 to vector<8x8xf32>
    %76 = arith.mulf %74, %75 : vector<8x8xf32>
    %77 = vector.extract_strided_slice %11 {offsets = [0, 24], sizes = [8, 8], strides = [1, 1]} : vector<8x32xf32> to vector<8x8xf32>
    %78 = arith.mulf %77, %76 : vector<8x8xf32>
    %cst_34 = arith.constant dense<0xFF800000> : vector<8xf32>
    %79 = vector.multi_reduction <maximumf>, %78, %cst_34 [1] : vector<8x8xf32> to vector<8xf32>
    %80 = vector.shape_cast %79 : vector<8xf32> to vector<8x1xf32>
    %81 = vector.broadcast %80 : vector<8x1xf32> to vector<8x8xf32>
    %82 = arith.subf %78, %81 : vector<8x8xf32>
    %83 = math.exp %82 : vector<8x8xf32>
    %cst_35 = arith.constant dense<0.000000e+00> : vector<8xf32>
    %84 = vector.multi_reduction <add>, %83, %cst_35 [1] : vector<8x8xf32> to vector<8xf32>
    %85 = vector.shape_cast %84 : vector<8xf32> to vector<8x1xf32>
    %86 = tpu.reciprocal %85 : vector<8x1xf32> -> vector<8x1xf32>
    %87 = vector.broadcast %86 : vector<8x1xf32> to vector<8x8xf32>
    %88 = arith.mulf %83, %87 : vector<8x8xf32>
    %cst_36 = arith.constant dense<0.000000e+00> : vector<8x32xf32>
    %89 = tpu.matmul %88, %12, %cst_36 {dimension_numbers = #tpu.dot_dimension_numbers<[1], [0], [0], [1], [0, 0, 1, 1], [], []>} : vector<8x8xf32>, vector<8x32xf32>, vector<8x32xf32> -> vector<8x32xf32>
    %90 = tpu.concatenate %35, %53, %71, %89 in 1 : vector<8x32xf32>, vector<8x32xf32>, vector<8x32xf32>, vector<8x32xf32> -> vector<8x128xf32>
    %c0_37 = arith.constant 0 : index
    %c0_38 = arith.constant 0 : index
    %91 = vector.load %arg9[%c0_37, %c0_38] : memref<128x64xf32, #tpu.memory_space<vmem>>, vector<128x64xf32>
    %cst_39 = arith.constant dense<0.000000e+00> : vector<8x64xf32>
    %92 = tpu.matmul %90, %91, %cst_39 {dimension_numbers = #tpu.dot_dimension_numbers<[1], [0], [0], [1], [0, 0, 1, 1], [], []>} : vector<8x128xf32>, vector<128x64xf32>, vector<8x64xf32> -> vector<8x64xf32>
    %c0_40 = arith.constant 0 : index
    %c0_41 = arith.constant 0 : index
    %93 = vector.load %arg10[%c0_40, %c0_41] : memref<1x64xf32, #tpu.memory_space<vmem>>, vector<1x64xf32>
    %94 = vector.broadcast %93 : vector<1x64xf32> to vector<8x64xf32>
    %95 = arith.addf %92, %94 : vector<8x64xf32>
    %c0_42 = arith.constant 0 : index
    %c0_43 = arith.constant 0 : index
    %96 = vector.load %arg11[%c0_42, %c0_43] : memref<8x64xf32, #tpu.memory_space<vmem>>, vector<8x64xf32>
    tpu.vector_store %arg11[%c0_42, %c0_43], %95 {strides = array<i32>} : memref<8x64xf32, #tpu.memory_space<vmem>>, vector<8x64xf32>,
    return
  }
  func.func @transform_0(%arg0: i32) -> (i32, i32) {
    %c0_i32 = arith.constant 0 : i32
    %c0_i32_0 = arith.constant 0 : i32
    %c0_i32_1 = arith.constant 0 : i32
    return %c0_i32, %c0_i32_0 : i32, i32
  }
  func.func @transform_1(%arg0: i32) -> (i32, i32) {
    %c0_i32 = arith.constant 0 : i32
    %c0_i32_0 = arith.constant 0 : i32
    %c0_i32_1 = arith.constant 0 : i32
    return %c0_i32, %c0_i32_0 : i32, i32
  }
  func.func @transform_2(%arg0: i32) -> (i32, i32) {
    %c0_i32 = arith.constant 0 : i32
    %c0_i32_0 = arith.constant 0 : i32
    %c0_i32_1 = arith.constant 0 : i32
    return %c0_i32, %c0_i32_0 : i32, i32
  }
  func.func @transform_3(%arg0: i32) -> (i32, i32) {
    %c0_i32 = arith.constant 0 : i32
    %c0_i32_0 = arith.constant 0 : i32
    %c0_i32_1 = arith.constant 0 : i32
    return %c0_i32, %c0_i32_0 : i32, i32
  }
  func.func @transform_4(%arg0: i32) -> (i32, i32) {
    %c0_i32 = arith.constant 0 : i32
    %c0_i32_0 = arith.constant 0 : i32
    %c0_i32_1 = arith.constant 0 : i32
    return %c0_i32, %c0_i32_0 : i32, i32
  }
  func.func @transform_5(%arg0: i32) -> (i32, i32) {
    %c0_i32 = arith.constant 0 : i32
    %c0_i32_0 = arith.constant 0 : i32
    %c0_i32_1 = arith.constant 0 : i32
    return %c0_i32, %c0_i32_0 : i32, i32
  }
  func.func @transform_6(%arg0: i32) -> (i32, i32) {
    %c0_i32 = arith.constant 0 : i32
    %c0_i32_0 = arith.constant 0 : i32
    %c0_i32_1 = arith.constant 0 : i32
    return %c0_i32, %c0_i32_0 : i32, i32
  }
  func.func @transform_7(%arg0: i32) -> (i32, i32) {
    %c0_i32 = arith.constant 0 : i32
    %c0_i32_0 = arith.constant 0 : i32
    %c0_i32_1 = arith.constant 0 : i32
    return %c0_i32, %c0_i32_0 : i32, i32
  }
  func.func @transform_8(%arg0: i32) -> (i32, i32) {
    %c0_i32 = arith.constant 0 : i32
    %c0_i32_0 = arith.constant 0 : i32
    %c0_i32_1 = arith.constant 0 : i32
    return %c0_i32, %c0_i32_0 : i32, i32
  }
  func.func @transform_9(%arg0: i32) -> (i32, i32) {
    %c0_i32 = arith.constant 0 : i32
    %c0_i32_0 = arith.constant 0 : i32
    %c0_i32_1 = arith.constant 0 : i32
    return %c0_i32, %c0_i32_0 : i32, i32
  }
  func.func @transform_10(%arg0: i32) -> (i32, i32) {
    %c0_i32 = arith.constant 0 : i32
    %c0_i32_0 = arith.constant 0 : i32
    %c0_i32_1 = arith.constant 0 : i32
    return %c0_i32, %c0_i32_0 : i32, i32
  }
}

</mosaic_0001>

<llo_original>
// kernel: tpu_custom_call.1
$region0: #{tpu_custom_call.1}
  #allocation0 [shape = 'u32[]', space=smem, size = 0x4, offset = 0x4, fixed_abs, tag = 'smem constant byte address 0x4 - core index']
  #allocation1 [shape = 'u32[144,128]{1,0:T(1,128)}', space=vmem, size = 0x12000, scoped, tag = 'internal scratch']
  %s0 = inlined_call_operand.vmem [shape: f32[8,128], index: 0, kind: input, shape index: {}]
  %s1 = inlined_call_operand.vmem [shape: f32[128,128], index: 1, kind: input, shape index: {}]
  %s2 = inlined_call_operand.vmem [shape: f32[1,128], index: 2, kind: input, shape index: {}]
  %s3 = inlined_call_operand.vmem [shape: f32[128,32], index: 3, kind: input, shape index: {}]
  %s4 = inlined_call_operand.vmem [shape: f32[1,32], index: 4, kind: input, shape index: {}]
  %s5 = inlined_call_operand.vmem [shape: f32[8,32], index: 5, kind: input, shape index: {}]
  %s6 = inlined_call_operand.vmem [shape: f32[32,128], index: 6, kind: input, shape index: {}]
  %s7 = inlined_call_operand.vmem [shape: f32[1,128], index: 7, kind: input, shape index: {}]
  %s8 = inlined_call_operand.vmem [shape: f32[128,64], index: 8, kind: input, shape index: {}]
  %s9 = inlined_call_operand.vmem [shape: f32[1,64], index: 9, kind: input, shape index: {}]
  %s10 = inlined_call_operand.hbm [shape: f32[8,64], index: 10, kind: output, shape index: {}]
  %s11 = sld [smem:[#allocation0]]
  $region50: #{tpu_custom_call.1} parent=0
    _
  %s13 = ssub.s32 1, %s11
  %s14 = scalar_select 0, %s13, %s11
  $region1: #{tpu_custom_call.1} parent=0
    #allocation2 [shape = 'u8[4096]{0}', space=vmem, size = 0x1000, scoped, tag = 'output window, operand 0, single buffered']
    #allocation3 [shape = 's32[1]{0}', space=sflag, size = 0x4, scoped, tag = 'scoped memory for tpu_custom_call.1']
    %15 = vsyncpa [#allocation3], 0
    // Predicated region
    $region2: #{tpu_custom_call.1} parent=1 // pred_check
      _
    $region3: #{tpu_custom_call.1} parent=1 // pred_check_branch
      %17 = sbr.rel (0) target = $region5
    $region4: #{tpu_custom_call.1} parent=1 // pred_region
      _
    $region5: #{tpu_custom_call.1} parent=1 // pred_fallthru
      _
    // Predicated region
    $region6: #{tpu_custom_call.1} parent=1 // pred_check
      _
    $region7: #{tpu_custom_call.1} parent=1 // pred_check_branch
      %19 = sbr.rel (0) target = $region9
    $region8: #{tpu_custom_call.1} parent=1 // pred_region
      _
    $region9: #{tpu_custom_call.1} parent=1 // pred_fallthru
      _
    // Predicated region
    $region10: #{tpu_custom_call.1} parent=1 // pred_check
      _
    $region11: #{tpu_custom_call.1} parent=1 // pred_check_branch
      %21 = sbr.rel (0) target = $region13
    $region12: #{tpu_custom_call.1} parent=1 // pred_region
      _
    $region13: #{tpu_custom_call.1} parent=1 // pred_fallthru
      _
    // Predicated region
    $region14: #{tpu_custom_call.1} parent=1 // pred_check
      _
    $region15: #{tpu_custom_call.1} parent=1 // pred_check_branch
      %23 = sbr.rel (0) target = $region17
    $region16: #{tpu_custom_call.1} parent=1 // pred_region
      _
    $region17: #{tpu_custom_call.1} parent=1 // pred_fallthru
      _
    // Predicated region
    $region18: #{tpu_custom_call.1} parent=1 // pred_check
      _
    $region19: #{tpu_custom_call.1} parent=1 // pred_check_branch
      %25 = sbr.rel (0) target = $region21
    $region20: #{tpu_custom_call.1} parent=1 // pred_region
      _
    $region21: #{tpu_custom_call.1} parent=1 // pred_fallthru
      _
    // Predicated region
    $region22: #{tpu_custom_call.1} parent=1 // pred_check
      _
    $region23: #{tpu_custom_call.1} parent=1 // pred_check_branch
      %27 = sbr.rel (0) target = $region25
    $region24: #{tpu_custom_call.1} parent=1 // pred_region
      _
    $region25: #{tpu_custom_call.1} parent=1 // pred_fallthru
      _
    // Predicated region
    $region26: #{tpu_custom_call.1} parent=1 // pred_check
      _
    $region27: #{tpu_custom_call.1} parent=1 // pred_check_branch
      %29 = sbr.rel (0) target = $region29
    $region28: #{tpu_custom_call.1} parent=1 // pred_region
      _
    $region29: #{tpu_custom_call.1} parent=1 // pred_fallthru
      _
    // Predicated region
    $region30: #{tpu_custom_call.1} parent=1 // pred_check
      _
    $region31: #{tpu_custom_call.1} parent=1 // pred_check_branch
      %31 = sbr.rel (0) target = $region33
    $region32: #{tpu_custom_call.1} parent=1 // pred_region
      _
    $region33: #{tpu_custom_call.1} parent=1 // pred_fallthru
      _
    // Predicated region
    $region34: #{tpu_custom_call.1} parent=1 // pred_check
      _
    $region35: #{tpu_custom_call.1} parent=1 // pred_check_branch
      %33 = sbr.rel (0) target = $region37
    $region36: #{tpu_custom_call.1} parent=1 // pred_region
      _
    $region37: #{tpu_custom_call.1} parent=1 // pred_fallthru
      _
    // Predicated region
    $region38: #{tpu_custom_call.1} parent=1 // pred_check
      _
    $region39: #{tpu_custom_call.1} parent=1 // pred_check_branch
      %35 = sbr.rel (0) target = $region41
    $region40: #{tpu_custom_call.1} parent=1 // pred_region
      _
    $region41: #{tpu_custom_call.1} parent=1 // pred_fallthru
      _
    %v36 = vld [vmem:[%s0] sm:$0xff]
    %v37 = vld [vmem:[%s1] sm:$0xff]
    %v38 = vld [vmem:[%s1 + $0x8] sm:$0xff]
    %v39 = vld [vmem:[%s1 + $0x10] sm:$0xff]
    %v40 = vld [vmem:[%s1 + $0x18] sm:$0xff]
    %v41 = vld [vmem:[%s1 + $0x20] sm:$0xff]
    %v42 = vld [vmem:[%s1 + $0x28] sm:$0xff]
    %v43 = vld [vmem:[%s1 + $0x30] sm:$0xff]
    %v44 = vld [vmem:[%s1 + $0x38] sm:$0xff]
    %v45 = vld [vmem:[%s1 + $0x40] sm:$0xff]
    %v46 = vld [vmem:[%s1 + $0x48] sm:$0xff]
    %v47 = vld [vmem:[%s1 + $0x50] sm:$0xff]
    %v48 = vld [vmem:[%s1 + $0x58] sm:$0xff]
    %v49 = vld [vmem:[%s1 + $0x60] sm:$0xff]
    %v50 = vld [vmem:[%s1 + $0x68] sm:$0xff]
    %v51 = vld [vmem:[%s1 + $0x70] sm:$0xff]
    %v52 = vld [vmem:[%s1 + $0x78] sm:$0xff]
    %v53 = vld [vmem:[%s2] sm:$0x1]
    %v55 = vlaneseq
    %v56 = vshrl.u32 %v55, 7
    %v57 = vsub.s32 0, %v56
    %v58 = vrot.slane %v53, %v57
    %60 = vmatprep.subr.mxu0 0.0
    %61 = vmatpush1.msra.mxu0 %v37
    %62 = vmatprep.subr.mxu0 0.0
    %63 = vmatpush1.msra.mxu0 %v38
    %64 = vmatprep.subr.mxu0 0.0
    %65 = vmatpush1.msra.mxu0 %v39
    %66 = vmatprep.subr.mxu0 0.0
    %67 = vmatpush1.msra.mxu0 %v40
    %68 = vmatprep.subr.mxu0 0.0
    %69 = vmatpush1.msra.mxu0 %v41
    %70 = vmatprep.subr.mxu0 0.0
    %71 = vmatpush1.msra.mxu0 %v42
    %72 = vmatprep.subr.mxu0 0.0
    %73 = vmatpush1.msra.mxu0 %v43
    %74 = vmatprep.subr.mxu0 0.0
    %75 = vmatpush1.msra.mxu0 %v44
    %76 = vmatprep.subr.mxu0 0.0
    %77 = vmatpush1.msra.mxu0 %v45
    %78 = vmatprep.subr.mxu0 0.0
    %79 = vmatpush1.msra.mxu0 %v46
    %80 = vmatprep.subr.mxu0 0.0
    %81 = vmatpush1.msra.mxu0 %v47
    %82 = vmatprep.subr.mxu0 0.0
    %83 = vmatpush1.msra.mxu0 %v48
    %84 = vmatprep.subr.mxu0 0.0
    %85 = vmatpush1.msra.mxu0 %v49
    %86 = vmatprep.subr.mxu0 0.0
    %87 = vmatpush1.msra.mxu0 %v50
    %88 = vmatprep.subr.mxu0 0.0
    %89 = vmatpush1.msra.mxu0 %v51
    %90 = vmatprep.subr.mxu0 0.0
    %91 = vmatpush1.msra.mxu0 %v52
    %92 = vmatprep.subr.mxu0 0.0
    %93 = vmatpush1.msra.mxu0 0.0
    %94 = vmatprep.subr.mxu0 0.0
    %95 = vmatpush1.msra.mxu0 0.0
    %96 = vmatprep.subr.mxu0 0.0
    %97 = vmatpush1.msra.mxu0 0.0
    %98 = vmatprep.subr.mxu0 0.0
    %99 = vmatpush1.msra.mxu0 0.0
    %100 = vmatprep.subr.mxu0 0.0
    %101 = vmatpush1.msra.mxu0 0.0
    %102 = vmatprep.subr.mxu0 0.0
    %103 = vmatpush1.msra.mxu0 0.0
    %104 = vmatprep.subr.mxu0 0.0
    %105 = vmatpush1.msra.mxu0 0.0
    %106 = vmatprep.subr.mxu0 0.0
    %107 = vmatpush1.msra.mxu0 0.0
    %108 = vmatprep.subr.mxu0 0.0
    %109 = vmatpush1.msra.mxu0 0.0
    %110 = vmatprep.subr.mxu0 0.0
    %111 = vmatpush1.msra.mxu0 0.0
    %112 = vmatprep.subr.mxu0 0.0
    %113 = vmatpush1.msra.mxu0 0.0
    %114 = vmatprep.subr.mxu0 0.0
    %115 = vmatpush1.msra.mxu0 0.0
    %116 = vmatprep.subr.mxu0 0.0
    %117 = vmatpush1.msra.mxu0 0.0
    %118 = vmatprep.subr.mxu0 0.0
    %119 = vmatpush1.msra.mxu0 0.0
    %120 = vmatprep.subr.mxu0 0.0
    %121 = vmatpush1.msra.mxu0 0.0
    %122 = vmatprep.subr.mxu0 0.0
    %123 = vmatpush1.msra.mxu0 0.0
    %124 = vmatprep.mubr.f32.mxu0 0.0
    %125 = vmatmul.mubr.f32.gmra.mrb[0].mxu0 %v36
    %v126 = vpop.f32.mrb[0].mxu0
    %v127 = vadd.f32 %v58, %v126
    %v128 = vpop.f32.mrb[0].mxu0
    %129 = vdwg.mxu0
    %v130 = vtanh.pop %v127
    %v131 = vld [vmem:[%s3] sm:$0xff]
    %v132 = vld [vmem:[%s3 + $0x8] sm:$0xff]
    %v133 = vld [vmem:[%s3 + $0x10] sm:$0xff]
    %v134 = vld [vmem:[%s3 + $0x18] sm:$0xff]
    %v135 = vld [vmem:[%s3 + $0x20] sm:$0xff]
    %v136 = vld [vmem:[%s3 + $0x28] sm:$0xff]
    %v137 = vld [vmem:[%s3 + $0x30] sm:$0xff]
    %v138 = vld [vmem:[%s3 + $0x38] sm:$0xff]
    %v139 = vld [vmem:[%s3 + $0x40] sm:$0xff]
    %v140 = vld [vmem:[%s3 + $0x48] sm:$0xff]
    %v141 = vld [vmem:[%s3 + $0x50] sm:$0xff]
    %v142 = vld [vmem:[%s3 + $0x58] sm:$0xff]
    %v143 = vld [vmem:[%s3 + $0x60] sm:$0xff]
    %v144 = vld [vmem:[%s3 + $0x68] sm:$0xff]
    %v145 = vld [vmem:[%s3 + $0x70] sm:$0xff]
    %v146 = vld [vmem:[%s3 + $0x78] sm:$0xff]
    %v147 = vld [vmem:[%s4] sm:$0x1]
    %v149 = vlaneseq
    %v150 = vshrl.u32 %v149, 7
    %v151 = vsub.s32 0, %v150
    %v152 = vrot.slane %v147, %v151
    %154 = vmatprep.subr.mxu0 0.0
    %155 = vmatpush1.msra.mxu0 %v131
    %156 = vmatprep.subr.mxu0 0.0
    %157 = vmatpush1.msra.mxu0 %v132
    %158 = vmatprep.subr.mxu0 0.0
    %159 = vmatpush1.msra.mxu0 %v133
    %160 = vmatprep.subr.mxu0 0.0
    %161 = vmatpush1.msra.mxu0 %v134
    %162 = vmatprep.subr.mxu0 0.0
    %163 = vmatpush1.msra.mxu0 %v135
    %164 = vmatprep.subr.mxu0 0.0
    %165 = vmatpush1.msra.mxu0 %v136
    %166 = vmatprep.subr.mxu0 0.0
    %167 = vmatpush1.msra.mxu0 %v137
    %168 = vmatprep.subr.mxu0 0.0
    %169 = vmatpush1.msra.mxu0 %v138
    %170 = vmatprep.subr.mxu0 0.0
    %171 = vmatpush1.msra.mxu0 %v139
    %172 = vmatprep.subr.mxu0 0.0
    %173 = vmatpush1.msra.mxu0 %v140
    %174 = vmatprep.subr.mxu0 0.0
    %175 = vmatpush1.msra.mxu0 %v141
    %176 = vmatprep.subr.mxu0 0.0
    %177 = vmatpush1.msra.mxu0 %v142
    %178 = vmatprep.subr.mxu0 0.0
    %179 = vmatpush1.msra.mxu0 %v143
    %180 = vmatprep.subr.mxu0 0.0
    %181 = vmatpush1.msra.mxu0 %v144
    %182 = vmatprep.subr.mxu0 0.0
    %183 = vmatpush1.msra.mxu0 %v145
    %184 = vmatprep.subr.mxu0 0.0
    %185 = vmatpush1.msra.mxu0 %v146
    %186 = vmatprep.subr.mxu0 0.0
    %187 = vmatpush1.msra.mxu0 0.0
    %188 = vmatprep.subr.mxu0 0.0
    %189 = vmatpush1.msra.mxu0 0.0
    %190 = vmatprep.subr.mxu0 0.0
    %191 = vmatpush1.msra.mxu0 0.0
    %192 = vmatprep.subr.mxu0 0.0
    %193 = vmatpush1.msra.mxu0 0.0
    %194 = vmatprep.subr.mxu0 0.0
    %195 = vmatpush1.msra.mxu0 0.0
    %196 = vmatprep.subr.mxu0 0.0
    %197 = vmatpush1.msra.mxu0 0.0
    %198 = vmatprep.subr.mxu0 0.0
    %199 = vmatpush1.msra.mxu0 0.0
    %200 = vmatprep.subr.mxu0 0.0
    %201 = vmatpush1.msra.mxu0 0.0
    %202 = vmatprep.subr.mxu0 0.0
    %203 = vmatpush1.msra.mxu0 0.0
    %204 = vmatprep.subr.mxu0 0.0
    %205 = vmatpush1.msra.mxu0 0.0
    %206 = vmatprep.subr.mxu0 0.0
    %207 = vmatpush1.msra.mxu0 0.0
    %208 = vmatprep.subr.mxu0 0.0
    %209 = vmatpush1.msra.mxu0 0.0
    %210 = vmatprep.subr.mxu0 0.0
    %211 = vmatpush1.msra.mxu0 0.0
    %212 = vmatprep.subr.mxu0 0.0
    %213 = vmatpush1.msra.mxu0 0.0
    %214 = vmatprep.subr.mxu0 0.0
    %215 = vmatpush1.msra.mxu0 0.0
    %216 = vmatprep.subr.mxu0 0.0
    %217 = vmatpush1.msra.mxu0 0.0
    %218 = vmatprep.mubr.f32.mxu0 0.0
    %219 = vmatmul.mubr.f32.gmra.mrb[0].mxu0 %v130
    %v220 = vpop.f32.mrb[0].mxu0
    %v221 = vadd.f32 %v152, %v220
    %v222 = vpop.f32.mrb[0].mxu0
    %223 = vdwg.mxu0
    %v224 = vld [vmem:[%s5] sm:$0xff]
    %v225 = vld [vmem:[%s6] sm:$0xff]
    %v226 = vld [vmem:[%s6 + $0x8] sm:$0xff]
    %v227 = vld [vmem:[%s6 + $0x10] sm:$0xff]
    %v228 = vld [vmem:[%s6 + $0x18] sm:$0xff]
    %v229 = vld [vmem:[%s7] sm:$0x1]
    %v231 = vlaneseq
    %v232 = vshrl.u32 %v231, 7
    %v233 = vsub.s32 0, %v232
    %v234 = vrot.slane %v229, %v233
    %vm236 = vcmask 261120
    %v238 = vsel %vm236, %v224, 0
    %240 = vmatprep.subr.mxu0 0.0
    %241 = vmatpush1.msra.mxu0 %v225
    %242 = vmatprep.subr.mxu0 0.0
    %243 = vmatpush1.msra.mxu0 %v226
    %244 = vmatprep.subr.mxu0 0.0
    %245 = vmatpush1.msra.mxu0 %v227
    %246 = vmatprep.subr.mxu0 0.0
    %247 = vmatpush1.msra.mxu0 %v228
    %248 = vmatprep.subr.mxu0 0.0
    %249 = vmatpush1.msra.mxu0 0.0
    %250 = vmatprep.subr.mxu0 0.0
    %251 = vmatpush1.msra.mxu0 0.0
    %252 = vmatprep.subr.mxu0 0.0
    %253 = vmatpush1.msra.mxu0 0.0
    %254 = vmatprep.subr.mxu0 0.0
    %255 = vmatpush1.msra.mxu0 0.0
    %256 = vmatprep.subr.mxu0 0.0
    %257 = vmatpush1.msra.mxu0 0.0
    %258 = vmatprep.subr.mxu0 0.0
    %259 = vmatpush1.msra.mxu0 0.0
    %260 = vmatprep.subr.mxu0 0.0
    %261 = vmatpush1.msra.mxu0 0.0
    %262 = vmatprep.subr.mxu0 0.0
    %263 = vmatpush1.msra.mxu0 0.0
    %264 = vmatprep.subr.mxu0 0.0
    %265 = vmatpush1.msra.mxu0 0.0
    %266 = vmatprep.subr.mxu0 0.0
    %267 = vmatpush1.msra.mxu0 0.0
    %268 = vmatprep.subr.mxu0 0.0
    %269 = vmatpush1.msra.mxu0 0.0
    %270 = vmatprep.subr.mxu0 0.0
    %271 = vmatpush1.msra.mxu0 0.0
    %272 = vmatprep.subr.mxu0 0.0
    %273 = vmatpush1.msra.mxu0 0.0
    %274 = vmatprep.subr.mxu0 0.0
    %275 = vmatpush1.msra.mxu0 0.0
    %276 = vmatprep.subr.mxu0 0.0
    %277 = vmatpush1.msra.mxu0 0.0
    %278 = vmatprep.subr.mxu0 0.0
    %279 = vmatpush1.msra.mxu0 0.0
    %280 = vmatprep.subr.mxu0 0.0
    %281 = vmatpush1.msra.mxu0 0.0
    %282 = vmatprep.subr.mxu0 0.0
    %283 = vmatpush1.msra.mxu0 0.0
    %284 = vmatprep.subr.mxu0 0.0
    %285 = vmatpush1.msra.mxu0 0.0
    %286 = vmatprep.subr.mxu0 0.0
    %287 = vmatpush1.msra.mxu0 0.0
    %288 = vmatprep.subr.mxu0 0.0
    %289 = vmatpush1.msra.mxu0 0.0
    %290 = vmatprep.subr.mxu0 0.0
    %291 = vmatpush1.msra.mxu0 0.0
    %292 = vmatprep.subr.mxu0 0.0
    %293 = vmatpush1.msra.mxu0 0.0
    %294 = vmatprep.subr.mxu0 0.0
    %295 = vmatpush1.msra.mxu0 0.0
    %296 = vmatprep.subr.mxu0 0.0
    %297 = vmatpush1.msra.mxu0 0.0
    %298 = vmatprep.subr.mxu0 0.0
    %299 = vmatpush1.msra.mxu0 0.0
    %300 = vmatprep.subr.mxu0 0.0
    %301 = vmatpush1.msra.mxu0 0.0
    %302 = vmatprep.subr.mxu0 0.0
    %303 = vmatpush1.msra.mxu0 0.0
    %304 = vmatprep.mubr.f32.mxu0 0.0
    %305 = vmatmul.mubr.f32.gmra.mrb[0].mxu0 %v238
    %v306 = vpop.f32.mrb[0].mxu0
    %v307 = vadd.f32 %v234, %v306
    %v308 = vpop.f32.mrb[0].mxu0
    %309 = vdwg.mxu0
    %311 = vrot.lane.b32.xlu0 %v307, 64
    %v312 = vpop.permute.xlu0 %311
    %vm313 = vcmask 130048
    %v314 = vsel %vm313, %v307, 0
    %v316 = vsel %vm313, %v312, 0
    %318 = vmatprep.subr.mxu0 0.0
    %319 = vmatpush1.xpose.msra.mxu0 %v316
    %320 = vmatprep.subr.mxu0 0.0
    %321 = vmatpush1.xpose.msra.mxu0 0.0
    %322 = vmatprep.subr.mxu0 0.0
    %323 = vmatpush1.xpose.msra.mxu0 0.0
    %324 = vmatprep.subr.mxu0 0.0
    %325 = vmatpush1.xpose.msra.mxu0 0.0
    %326 = vmatprep.subr.mxu0 0.0
    %327 = vmatpush1.xpose.msra.mxu0 0.0
    %328 = vmatprep.subr.mxu0 0.0
    %329 = vmatpush1.xpose.msra.mxu0 0.0
    %330 = vmatprep.subr.mxu0 0.0
    %331 = vmatpush1.xpose.msra.mxu0 0.0
    %332 = vmatprep.subr.mxu0 0.0
    %333 = vmatpush1.xpose.msra.mxu0 0.0
    %334 = vmatprep.subr.mxu0 0.0
    %335 = vmatpush1.xpose.msra.mxu0 0.0
    %336 = vmatprep.subr.mxu0 0.0
    %337 = vmatpush1.xpose.msra.mxu0 0.0
    %338 = vmatprep.subr.mxu0 0.0
    %339 = vmatpush1.xpose.msra.mxu0 0.0
    %340 = vmatprep.subr.mxu0 0.0
    %341 = vmatpush1.xpose.msra.mxu0 0.0
    %342 = vmatprep.subr.mxu0 0.0
    %343 = vmatpush1.xpose.msra.mxu0 0.0
    %344 = vmatprep.subr.mxu0 0.0
    %345 = vmatpush1.xpose.msra.mxu0 0.0
    %346 = vmatprep.subr.mxu0 0.0
    %347 = vmatpush1.xpose.msra.mxu0 0.0
    %348 = vmatprep.subr.mxu0 0.0
    %349 = vmatpush1.xpose.msra.mxu0 0.0
    %350 = vmatprep.subr.mxu0 0.0
    %351 = vmatpush1.xpose.msra.mxu0 0.0
    %352 = vmatprep.subr.mxu0 0.0
    %353 = vmatpush1.xpose.msra.mxu0 0.0
    %354 = vmatprep.subr.mxu0 0.0
    %355 = vmatpush1.xpose.msra.mxu0 0.0
    %356 = vmatprep.subr.mxu0 0.0
    %357 = vmatpush1.xpose.msra.mxu0 0.0
    %358 = vmatprep.subr.mxu0 0.0
    %359 = vmatpush1.xpose.msra.mxu0 0.0
    %360 = vmatprep.subr.mxu0 0.0
    %361 = vmatpush1.xpose.msra.mxu0 0.0
    %362 = vmatprep.subr.mxu0 0.0
    %363 = vmatpush1.xpose.msra.mxu0 0.0
    %364 = vmatprep.subr.mxu0 0.0
    %365 = vmatpush1.xpose.msra.mxu0 0.0
    %366 = vmatprep.subr.mxu0 0.0
    %367 = vmatpush1.xpose.msra.mxu0 0.0
    %368 = vmatprep.subr.mxu0 0.0
    %369 = vmatpush1.xpose.msra.mxu0 0.0
    %370 = vmatprep.subr.mxu0 0.0
    %371 = vmatpush1.xpose.msra.mxu0 0.0
    %372 = vmatprep.subr.mxu0 0.0
    %373 = vmatpush1.xpose.msra.mxu0 0.0
    %374 = vmatprep.subr.mxu0 0.0
    %375 = vmatpush1.xpose.msra.mxu0 0.0
    %376 = vmatprep.subr.mxu0 0.0
    %377 = vmatpush1.xpose.msra.mxu0 0.0
    %378 = vmatprep.subr.mxu0 0.0
    %379 = vmatpush1.xpose.msra.mxu0 0.0
    %380 = vmatprep.subr.mxu0 0.0
    %381 = vmatpush1.xpose.msra.mxu0 0.0
    %382 = vmatprep.mubr.f32.mxu0 0.0
    %383 = vmatmul.mubr.f32.gmra.mrb[0].mxu0 %v314
    %v384 = vpop.f32.mrb[0].mxu0
    %v385 = vadd.f32 0.0, %v384
    %v386 = vpop.f32.mrb[0].mxu0
    %387 = vdwg.mxu0
    %v388 = vmul.f32 %v385, 0.25
    %v389 = vmul.f32 %v221, %v388
    %vm390 = vcmask 64512
    %v391 = vsel %vm390, %v389, -inf
    %392 = vmax.xlane.f32.xlu0 %v391
    %v393 = vpop.xlane.xlu0 %392
    %v394 = vsub.f32 %v389, %v393
    %v395 = vmul.f32 %v394, 1.442695
    %v396 = vpow.pop %v395
    %v397 = vsel %vm390, %v396, 0.0
    %398 = vadd.xlane.f32.xlu0 %v397
    %v399 = vpop.xlane.xlu0 %398
    %v400 = vrcp.pop %v399
    %v401 = vmul.f32 %v396, %v400
    %v403 = vsel %vm390, %v401, 0
    %405 = vmatprep.subr.mxu0 0.0
    %406 = vmatpush1.msra.mxu0 %v224
    %407 = vmatprep.subr.mxu0 0.0
    %408 = vmatpush1.msra.mxu0 0.0
    %409 = vmatprep.subr.mxu0 0.0
    %410 = vmatpush1.msra.mxu0 0.0
    %411 = vmatprep.subr.mxu0 0.0
    %412 = vmatpush1.msra.mxu0 0.0
    %413 = vmatprep.subr.mxu0 0.0
    %414 = vmatpush1.msra.mxu0 0.0
    %415 = vmatprep.subr.mxu0 0.0
    %416 = vmatpush1.msra.mxu0 0.0
    %417 = vmatprep.subr.mxu0 0.0
    %418 = vmatpush1.msra.mxu0 0.0
    %419 = vmatprep.subr.mxu0 0.0
    %420 = vmatpush1.msra.mxu0 0.0
    %421 = vmatprep.subr.mxu0 0.0
    %422 = vmatpush1.msra.mxu0 0.0
    %423 = vmatprep.subr.mxu0 0.0
    %424 = vmatpush1.msra.mxu0 0.0
    %425 = vmatprep.subr.mxu0 0.0
    %426 = vmatpush1.msra.mxu0 0.0
    %427 = vmatprep.subr.mxu0 0.0
    %428 = vmatpush1.msra.mxu0 0.0
    %429 = vmatprep.subr.mxu0 0.0
    %430 = vmatpush1.msra.mxu0 0.0
    %431 = vmatprep.subr.mxu0 0.0
    %432 = vmatpush1.msra.mxu0 0.0
    %433 = vmatprep.subr.mxu0 0.0
    %434 = vmatpush1.msra.mxu0 0.0
    %435 = vmatprep.subr.mxu0 0.0
    %436 = vmatpush1.msra.mxu0 0.0
    %437 = vmatprep.subr.mxu0 0.0
    %438 = vmatpush1.msra.mxu0 0.0
    %439 = vmatprep.subr.mxu0 0.0
    %440 = vmatpush1.msra.mxu0 0.0
    %441 = vmatprep.subr.mxu0 0.0
    %442 = vmatpush1.msra.mxu0 0.0
    %443 = vmatprep.subr.mxu0 0.0
    %444 = vmatpush1.msra.mxu0 0.0
    %445 = vmatprep.subr.mxu0 0.0
    %446 = vmatpush1.msra.mxu0 0.0
    %447 = vmatprep.subr.mxu0 0.0
    %448 = vmatpush1.msra.mxu0 0.0
    %449 = vmatprep.subr.mxu0 0.0
    %450 = vmatpush1.msra.mxu0 0.0
    %451 = vmatprep.subr.mxu0 0.0
    %452 = vmatpush1.msra.mxu0 0.0
    %453 = vmatprep.subr.mxu0 0.0
    %454 = vmatpush1.msra.mxu0 0.0
    %455 = vmatprep.subr.mxu0 0.0
    %456 = vmatpush1.msra.mxu0 0.0
    %457 = vmatprep.subr.mxu0 0.0
    %458 = vmatpush1.msra.mxu0 0.0
    %459 = vmatprep.subr.mxu0 0.0
    %460 = vmatpush1.msra.mxu0 0.0
    %461 = vmatprep.subr.mxu0 0.0
    %462 = vmatpush1.msra.mxu0 0.0
    %463 = vmatprep.subr.mxu0 0.0
    %464 = vmatpush1.msra.mxu0 0.0
    %465 = vmatprep.subr.mxu0 0.0
    %466 = vmatpush1.msra.mxu0 0.0
    %467 = vmatprep.subr.mxu0 0.0
    %468 = vmatpush1.msra.mxu0 0.0
    %469 = vmatprep.mubr.f32.mxu0 0.0
    %470 = vmatmul.mubr.f32.gmra.mrb[0].mxu0 %v403
    %v471 = vpop.f32.mrb[0].mxu0
    %v472 = vadd.f32 0.0, %v471
    %v473 = vpop.f32.mrb[0].mxu0
    %474 = vdwg.mxu0
    %475 = vrot.lane.b32.xlu0 %v307, 112
    %v476 = vpop.permute.xlu0 %475
    %477 = vrot.lane.b32.xlu0 %v307, 48
    %v478 = vpop.permute.xlu0 %477
    %v479 = vsel %vm313, %v476, 0
    %v481 = vsel %vm313, %v478, 0
    %483 = vmatprep.subr.mxu0 0.0
    %484 = vmatpush1.xpose.msra.mxu0 %v481
    %485 = vmatprep.subr.mxu0 0.0
    %486 = vmatpush1.xpose.msra.mxu0 0.0
    %487 = vmatprep.subr.mxu0 0.0
    %488 = vmatpush1.xpose.msra.mxu0 0.0
    %489 = vmatprep.subr.mxu0 0.0
    %490 = vmatpush1.xpose.msra.mxu0 0.0
    %491 = vmatprep.subr.mxu0 0.0
    %492 = vmatpush1.xpose.msra.mxu0 0.0
    %493 = vmatprep.subr.mxu0 0.0
    %494 = vmatpush1.xpose.msra.mxu0 0.0
    %495 = vmatprep.subr.mxu0 0.0
    %496 = vmatpush1.xpose.msra.mxu0 0.0
    %497 = vmatprep.subr.mxu0 0.0
    %498 = vmatpush1.xpose.msra.mxu0 0.0
    %499 = vmatprep.subr.mxu0 0.0
    %500 = vmatpush1.xpose.msra.mxu0 0.0
    %501 = vmatprep.subr.mxu0 0.0
    %502 = vmatpush1.xpose.msra.mxu0 0.0
    %503 = vmatprep.subr.mxu0 0.0
    %504 = vmatpush1.xpose.msra.mxu0 0.0
    %505 = vmatprep.subr.mxu0 0.0
    %506 = vmatpush1.xpose.msra.mxu0 0.0
    %507 = vmatprep.subr.mxu0 0.0
    %508 = vmatpush1.xpose.msra.mxu0 0.0
    %509 = vmatprep.subr.mxu0 0.0
    %510 = vmatpush1.xpose.msra.mxu0 0.0
    %511 = vmatprep.subr.mxu0 0.0
    %512 = vmatpush1.xpose.msra.mxu0 0.0
    %513 = vmatprep.subr.mxu0 0.0
    %514 = vmatpush1.xpose.msra.mxu0 0.0
    %515 = vmatprep.subr.mxu0 0.0
    %516 = vmatpush1.xpose.msra.mxu0 0.0
    %517 = vmatprep.subr.mxu0 0.0
    %518 = vmatpush1.xpose.msra.mxu0 0.0
    %519 = vmatprep.subr.mxu0 0.0
    %520 = vmatpush1.xpose.msra.mxu0 0.0
    %521 = vmatprep.subr.mxu0 0.0
    %522 = vmatpush1.xpose.msra.mxu0 0.0
    %523 = vmatprep.subr.mxu0 0.0
    %524 = vmatpush1.xpose.msra.mxu0 0.0
    %525 = vmatprep.subr.mxu0 0.0
    %526 = vmatpush1.xpose.msra.mxu0 0.0
    %527 = vmatprep.subr.mxu0 0.0
    %528 = vmatpush1.xpose.msra.mxu0 0.0
    %529 = vmatprep.subr.mxu0 0.0
    %530 = vmatpush1.xpose.msra.mxu0 0.0
    %531 = vmatprep.subr.mxu0 0.0
    %532 = vmatpush1.xpose.msra.mxu0 0.0
    %533 = vmatprep.subr.mxu0 0.0
    %534 = vmatpush1.xpose.msra.mxu0 0.0
    %535 = vmatprep.subr.mxu0 0.0
    %536 = vmatpush1.xpose.msra.mxu0 0.0
    %537 = vmatprep.subr.mxu0 0.0
    %538 = vmatpush1.xpose.msra.mxu0 0.0
    %539 = vmatprep.subr.mxu0 0.0
    %540 = vmatpush1.xpose.msra.mxu0 0.0
    %541 = vmatprep.subr.mxu0 0.0
    %542 = vmatpush1.xpose.msra.mxu0 0.0
    %543 = vmatprep.subr.mxu0 0.0
    %544 = vmatpush1.xpose.msra.mxu0 0.0
    %545 = vmatprep.subr.mxu0 0.0
    %546 = vmatpush1.xpose.msra.mxu0 0.0
    %547 = vmatprep.mubr.f32.mxu0 0.0
    %548 = vmatmul.mubr.f32.gmra.mrb[0].mxu0 %v479
    %v549 = vpop.f32.mrb[0].mxu0
    %v550 = vadd.f32 0.0, %v549
    %v551 = vpop.f32.mrb[0].mxu0
    %552 = vdwg.mxu0
    %v553 = vmul.f32 %v550, 0.25
    %555 = vrot.lane.b32.xlu0 %v553, 8
    %v556 = vpop.permute.xlu0 %555
    %v558 = vmul.f32 %v221, %v556
    %vm559 = vcmask 130112
    %v560 = vsel %vm559, %v558, -inf
    %561 = vmax.xlane.f32.xlu0 %v560
    %v562 = vpop.xlane.xlu0 %561
    %v563 = vsub.f32 %v558, %v562
    %v564 = vmul.f32 %v563, 1.442695
    %v565 = vpow.pop %v564
    %567 = vrot.lane.b32.xlu0 %v565, 120
    %v568 = vpop.permute.xlu0 %567
    %v570 = vsel %vm390, %v568, 0.0
    %571 = vadd.xlane.f32.xlu0 %v570
    %v572 = vpop.xlane.xlu0 %571
    %v573 = vrcp.pop %v572
    %v574 = vmul.f32 %v565, %v573
    %576 = vrot.lane.b32.xlu0 %v574, 120
    %v577 = vpop.permute.xlu0 %576
    %v578 = vsel %vm390, %v577, 0
    %580 = vmatprep.subr.mxu0 0.0
    %581 = vmatpush1.msra.mxu0 %v224
    %582 = vmatprep.subr.mxu0 0.0
    %583 = vmatpush1.msra.mxu0 0.0
    %584 = vmatprep.subr.mxu0 0.0
    %585 = vmatpush1.msra.mxu0 0.0
    %586 = vmatprep.subr.mxu0 0.0
    %587 = vmatpush1.msra.mxu0 0.0
    %588 = vmatprep.subr.mxu0 0.0
    %589 = vmatpush1.msra.mxu0 0.0
    %590 = vmatprep.subr.mxu0 0.0
    %591 = vmatpush1.msra.mxu0 0.0
    %592 = vmatprep.subr.mxu0 0.0
    %593 = vmatpush1.msra.mxu0 0.0
    %594 = vmatprep.subr.mxu0 0.0
    %595 = vmatpush1.msra.mxu0 0.0
    %596 = vmatprep.subr.mxu0 0.0
    %597 = vmatpush1.msra.mxu0 0.0
    %598 = vmatprep.subr.mxu0 0.0
    %599 = vmatpush1.msra.mxu0 0.0
    %600 = vmatprep.subr.mxu0 0.0
    %601 = vmatpush1.msra.mxu0 0.0
    %602 = vmatprep.subr.mxu0 0.0
    %603 = vmatpush1.msra.mxu0 0.0
    %604 = vmatprep.subr.mxu0 0.0
    %605 = vmatpush1.msra.mxu0 0.0
    %606 = vmatprep.subr.mxu0 0.0
    %607 = vmatpush1.msra.mxu0 0.0
    %608 = vmatprep.subr.mxu0 0.0
    %609 = vmatpush1.msra.mxu0 0.0
    %610 = vmatprep.subr.mxu0 0.0
    %611 = vmatpush1.msra.mxu0 0.0
    %612 = vmatprep.subr.mxu0 0.0
    %613 = vmatpush1.msra.mxu0 0.0
    %614 = vmatprep.subr.mxu0 0.0
    %615 = vmatpush1.msra.mxu0 0.0
    %616 = vmatprep.subr.mxu0 0.0
    %617 = vmatpush1.msra.mxu0 0.0
    %618 = vmatprep.subr.mxu0 0.0
    %619 = vmatpush1.msra.mxu0 0.0
    %620 = vmatprep.subr.mxu0 0.0
    %621 = vmatpush1.msra.mxu0 0.0
    %622 = vmatprep.subr.mxu0 0.0
    %623 = vmatpush1.msra.mxu0 0.0
    %624 = vmatprep.subr.mxu0 0.0
    %625 = vmatpush1.msra.mxu0 0.0
    %626 = vmatprep.subr.mxu0 0.0
    %627 = vmatpush1.msra.mxu0 0.0
    %628 = vmatprep.subr.mxu0 0.0
    %629 = vmatpush1.msra.mxu0 0.0
    %630 = vmatprep.subr.mxu0 0.0
    %631 = vmatpush1.msra.mxu0 0.0
    %632 = vmatprep.subr.mxu0 0.0
    %633 = vmatpush1.msra.mxu0 0.0
    %634 = vmatprep.subr.mxu0 0.0
    %635 = vmatpush1.msra.mxu0 0.0
    %636 = vmatprep.subr.mxu0 0.0
    %637 = vmatpush1.msra.mxu0 0.0
    %638 = vmatprep.subr.mxu0 0.0
    %639 = vmatpush1.msra.mxu0 0.0
    %640 = vmatprep.subr.mxu0 0.0
    %641 = vmatpush1.msra.mxu0 0.0
    %642 = vmatprep.subr.mxu0 0.0
    %643 = vmatpush1.msra.mxu0 0.0
    %644 = vmatprep.mubr.f32.mxu0 0.0
    %645 = vmatmul.mubr.f32.gmra.mrb[0].mxu0 %v578
    %v646 = vpop.f32.mrb[0].mxu0
    %v647 = vadd.f32 0.0, %v646
    %v648 = vpop.f32.mrb[0].mxu0
    %649 = vdwg.mxu0
    %650 = vrot.lane.b32.xlu0 %v307, 96
    %v651 = vpop.permute.xlu0 %650
    %652 = vrot.lane.b32.xlu0 %v307, 32
    %v653 = vpop.permute.xlu0 %652
    %v654 = vsel %vm313, %v651, 0
    %v656 = vsel %vm313, %v653, 0
    %658 = vmatprep.subr.mxu0 0.0
    %659 = vmatpush1.xpose.msra.mxu0 %v656
    %660 = vmatprep.subr.mxu0 0.0
    %661 = vmatpush1.xpose.msra.mxu0 0.0
    %662 = vmatprep.subr.mxu0 0.0
    %663 = vmatpush1.xpose.msra.mxu0 0.0
    %664 = vmatprep.subr.mxu0 0.0
    %665 = vmatpush1.xpose.msra.mxu0 0.0
    %666 = vmatprep.subr.mxu0 0.0
    %667 = vmatpush1.xpose.msra.mxu0 0.0
    %668 = vmatprep.subr.mxu0 0.0
    %669 = vmatpush1.xpose.msra.mxu0 0.0
    %670 = vmatprep.subr.mxu0 0.0
    %671 = vmatpush1.xpose.msra.mxu0 0.0
    %672 = vmatprep.subr.mxu0 0.0
    %673 = vmatpush1.xpose.msra.mxu0 0.0
    %674 = vmatprep.subr.mxu0 0.0
    %675 = vmatpush1.xpose.msra.mxu0 0.0
    %676 = vmatprep.subr.mxu0 0.0
    %677 = vmatpush1.xpose.msra.mxu0 0.0
    %678 = vmatprep.subr.mxu0 0.0
    %679 = vmatpush1.xpose.msra.mxu0 0.0
    %680 = vmatprep.subr.mxu0 0.0
    %681 = vmatpush1.xpose.msra.mxu0 0.0
    %682 = vmatprep.subr.mxu0 0.0
    %683 = vmatpush1.xpose.msra.mxu0 0.0
    %684 = vmatprep.subr.mxu0 0.0
    %685 = vmatpush1.xpose.msra.mxu0 0.0
    %686 = vmatprep.subr.mxu0 0.0
    %687 = vmatpush1.xpose.msra.mxu0 0.0
    %688 = vmatprep.subr.mxu0 0.0
    %689 = vmatpush1.xpose.msra.mxu0 0.0
    %690 = vmatprep.subr.mxu0 0.0
    %691 = vmatpush1.xpose.msra.mxu0 0.0
    %692 = vmatprep.subr.mxu0 0.0
    %693 = vmatpush1.xpose.msra.mxu0 0.0
    %694 = vmatprep.subr.mxu0 0.0
    %695 = vmatpush1.xpose.msra.mxu0 0.0
    %696 = vmatprep.subr.mxu0 0.0
    %697 = vmatpush1.xpose.msra.mxu0 0.0
    %698 = vmatprep.subr.mxu0 0.0
    %699 = vmatpush1.xpose.msra.mxu0 0.0
    %700 = vmatprep.subr.mxu0 0.0
    %701 = vmatpush1.xpose.msra.mxu0 0.0
    %702 = vmatprep.subr.mxu0 0.0
    %703 = vmatpush1.xpose.msra.mxu0 0.0
    %704 = vmatprep.subr.mxu0 0.0
    %705 = vmatpush1.xpose.msra.mxu0 0.0
    %706 = vmatprep.subr.mxu0 0.0
    %707 = vmatpush1.xpose.msra.mxu0 0.0
    %708 = vmatprep.subr.mxu0 0.0
    %709 = vmatpush1.xpose.msra.mxu0 0.0
    %710 = vmatprep.subr.mxu0 0.0
    %711 = vmatpush1.xpose.msra.mxu0 0.0
    %712 = vmatprep.subr.mxu0 0.0
    %713 = vmatpush1.xpose.msra.mxu0 0.0
    %714 = vmatprep.subr.mxu0 0.0
    %715 = vmatpush1.xpose.msra.mxu0 0.0
    %716 = vmatprep.subr.mxu0 0.0
    %717 = vmatpush1.xpose.msra.mxu0 0.0
    %718 = vmatprep.subr.mxu0 0.0
    %719 = vmatpush1.xpose.msra.mxu0 0.0
    %720 = vmatprep.subr.mxu0 0.0
    %721 = vmatpush1.xpose.msra.mxu0 0.0
    %722 = vmatprep.mubr.f32.mxu0 0.0
    %723 = vmatmul.mubr.f32.gmra.mrb[0].mxu0 %v654
    %v724 = vpop.f32.mrb[0].mxu0
    %v725 = vadd.f32 0.0, %v724
    %v726 = vpop.f32.mrb[0].mxu0
    %727 = vdwg.mxu0
    %v728 = vmul.f32 %v725, 0.25
    %730 = vrot.lane.b32.xlu0 %v728, 16
    %v731 = vpop.permute.xlu0 %730
    %v733 = vmul.f32 %v221, %v731
    %vm734 = vcmask 195712
    %v735 = vsel %vm734, %v733, -inf
    %736 = vmax.xlane.f32.xlu0 %v735
    %v737 = vpop.xlane.xlu0 %736
    %v738 = vsub.f32 %v733, %v737
    %v739 = vmul.f32 %v738, 1.442695
    %v740 = vpow.pop %v739
    %742 = vrot.lane.b32.xlu0 %v740, 112
    %v743 = vpop.permute.xlu0 %742
    %v745 = vsel %vm390, %v743, 0.0
    %746 = vadd.xlane.f32.xlu0 %v745
    %v747 = vpop.xlane.xlu0 %746
    %v748 = vrcp.pop %v747
    %v749 = vmul.f32 %v740, %v748
    %751 = vrot.lane.b32.xlu0 %v749, 112
    %v752 = vpop.permute.xlu0 %751
    %v753 = vsel %vm390, %v752, 0
    %755 = vmatprep.subr.mxu0 0.0
    %756 = vmatpush1.msra.mxu0 %v224
    %757 = vmatprep.subr.mxu0 0.0
    %758 = vmatpush1.msra.mxu0 0.0
    %759 = vmatprep.subr.mxu0 0.0
    %760 = vmatpush1.msra.mxu0 0.0
    %761 = vmatprep.subr.mxu0 0.0
    %762 = vmatpush1.msra.mxu0 0.0
    %763 = vmatprep.subr.mxu0 0.0
    %764 = vmatpush1.msra.mxu0 0.0
    %765 = vmatprep.subr.mxu0 0.0
    %766 = vmatpush1.msra.mxu0 0.0
    %767 = vmatprep.subr.mxu0 0.0
    %768 = vmatpush1.msra.mxu0 0.0
    %769 = vmatprep.subr.mxu0 0.0
    %770 = vmatpush1.msra.mxu0 0.0
    %771 = vmatprep.subr.mxu0 0.0
    %772 = vmatpush1.msra.mxu0 0.0
    %773 = vmatprep.subr.mxu0 0.0
    %774 = vmatpush1.msra.mxu0 0.0
    %775 = vmatprep.subr.mxu0 0.0
    %776 = vmatpush1.msra.mxu0 0.0
    %777 = vmatprep.subr.mxu0 0.0
    %778 = vmatpush1.msra.mxu0 0.0
    %779 = vmatprep.subr.mxu0 0.0
    %780 = vmatpush1.msra.mxu0 0.0
    %781 = vmatprep.subr.mxu0 0.0
    %782 = vmatpush1.msra.mxu0 0.0
    %783 = vmatprep.subr.mxu0 0.0
    %784 = vmatpush1.msra.mxu0 0.0
    %785 = vmatprep.subr.mxu0 0.0
    %786 = vmatpush1.msra.mxu0 0.0
    %787 = vmatprep.subr.mxu0 0.0
    %788 = vmatpush1.msra.mxu0 0.0
    %789 = vmatprep.subr.mxu0 0.0
    %790 = vmatpush1.msra.mxu0 0.0
    %791 = vmatprep.subr.mxu0 0.0
    %792 = vmatpush1.msra.mxu0 0.0
    %793 = vmatprep.subr.mxu0 0.0
    %794 = vmatpush1.msra.mxu0 0.0
    %795 = vmatprep.subr.mxu0 0.0
    %796 = vmatpush1.msra.mxu0 0.0
    %797 = vmatprep.subr.mxu0 0.0
    %798 = vmatpush1.msra.mxu0 0.0
    %799 = vmatprep.subr.mxu0 0.0
    %800 = vmatpush1.msra.mxu0 0.0
    %801 = vmatprep.subr.mxu0 0.0
    %802 = vmatpush1.msra.mxu0 0.0
    %803 = vmatprep.subr.mxu0 0.0
    %804 = vmatpush1.msra.mxu0 0.0
    %805 = vmatprep.subr.mxu0 0.0
    %806 = vmatpush1.msra.mxu0 0.0
    %807 = vmatprep.subr.mxu0 0.0
    %808 = vmatpush1.msra.mxu0 0.0
    %809 = vmatprep.subr.mxu0 0.0
    %810 = vmatpush1.msra.mxu0 0.0
    %811 = vmatprep.subr.mxu0 0.0
    %812 = vmatpush1.msra.mxu0 0.0
    %813 = vmatprep.subr.mxu0 0.0
    %814 = vmatpush1.msra.mxu0 0.0
    %815 = vmatprep.subr.mxu0 0.0
    %816 = vmatpush1.msra.mxu0 0.0
    %817 = vmatprep.subr.mxu0 0.0
    %818 = vmatpush1.msra.mxu0 0.0
    %819 = vmatprep.mubr.f32.mxu0 0.0
    %820 = vmatmul.mubr.f32.gmra.mrb[0].mxu0 %v753
    %v821 = vpop.f32.mrb[0].mxu0
    %v822 = vadd.f32 0.0, %v821
    %v823 = vpop.f32.mrb[0].mxu0
    %824 = vdwg.mxu0
    %825 = vrot.lane.b32.xlu0 %v307, 80
    %v826 = vpop.permute.xlu0 %825
    %827 = vrot.lane.b32.xlu0 %v307, 16
    %v828 = vpop.permute.xlu0 %827
    %v829 = vsel %vm313, %v826, 0
    %v831 = vsel %vm313, %v828, 0
    %833 = vmatprep.subr.mxu0 0.0
    %834 = vmatpush1.xpose.msra.mxu0 %v831
    %835 = vmatprep.subr.mxu0 0.0
    %836 = vmatpush1.xpose.msra.mxu0 0.0
    %837 = vmatprep.subr.mxu0 0.0
    %838 = vmatpush1.xpose.msra.mxu0 0.0
    %839 = vmatprep.subr.mxu0 0.0
    %840 = vmatpush1.xpose.msra.mxu0 0.0
    %841 = vmatprep.subr.mxu0 0.0
    %842 = vmatpush1.xpose.msra.mxu0 0.0
    %843 = vmatprep.subr.mxu0 0.0
    %844 = vmatpush1.xpose.msra.mxu0 0.0
    %845 = vmatprep.subr.mxu0 0.0
    %846 = vmatpush1.xpose.msra.mxu0 0.0
    %847 = vmatprep.subr.mxu0 0.0
    %848 = vmatpush1.xpose.msra.mxu0 0.0
    %849 = vmatprep.subr.mxu0 0.0
    %850 = vmatpush1.xpose.msra.mxu0 0.0
    %851 = vmatprep.subr.mxu0 0.0
    %852 = vmatpush1.xpose.msra.mxu0 0.0
    %853 = vmatprep.subr.mxu0 0.0
    %854 = vmatpush1.xpose.msra.mxu0 0.0
    %855 = vmatprep.subr.mxu0 0.0
    %856 = vmatpush1.xpose.msra.mxu0 0.0
    %857 = vmatprep.subr.mxu0 0.0
    %858 = vmatpush1.xpose.msra.mxu0 0.0
    %859 = vmatprep.subr.mxu0 0.0
    %860 = vmatpush1.xpose.msra.mxu0 0.0
    %861 = vmatprep.subr.mxu0 0.0
    %862 = vmatpush1.xpose.msra.mxu0 0.0
    %863 = vmatprep.subr.mxu0 0.0
    %864 = vmatpush1.xpose.msra.mxu0 0.0
    %865 = vmatprep.subr.mxu0 0.0
    %866 = vmatpush1.xpose.msra.mxu0 0.0
    %867 = vmatprep.subr.mxu0 0.0
    %868 = vmatpush1.xpose.msra.mxu0 0.0
    %869 = vmatprep.subr.mxu0 0.0
    %870 = vmatpush1.xpose.msra.mxu0 0.0
    %871 = vmatprep.subr.mxu0 0.0
    %872 = vmatpush1.xpose.msra.mxu0 0.0
    %873 = vmatprep.subr.mxu0 0.0
    %874 = vmatpush1.xpose.msra.mxu0 0.0
    %875 = vmatprep.subr.mxu0 0.0
    %876 = vmatpush1.xpose.msra.mxu0 0.0
    %877 = vmatprep.subr.mxu0 0.0
    %878 = vmatpush1.xpose.msra.mxu0 0.0
    %879 = vmatprep.subr.mxu0 0.0
    %880 = vmatpush1.xpose.msra.mxu0 0.0
    %881 = vmatprep.subr.mxu0 0.0
    %882 = vmatpush1.xpose.msra.mxu0 0.0
    %883 = vmatprep.subr.mxu0 0.0
    %884 = vmatpush1.xpose.msra.mxu0 0.0
    %885 = vmatprep.subr.mxu0 0.0
    %886 = vmatpush1.xpose.msra.mxu0 0.0
    %887 = vmatprep.subr.mxu0 0.0
    %888 = vmatpush1.xpose.msra.mxu0 0.0
    %889 = vmatprep.subr.mxu0 0.0
    %890 = vmatpush1.xpose.msra.mxu0 0.0
    %891 = vmatprep.subr.mxu0 0.0
    %892 = vmatpush1.xpose.msra.mxu0 0.0
    %893 = vmatprep.subr.mxu0 0.0
    %894 = vmatpush1.xpose.msra.mxu0 0.0
    %895 = vmatprep.subr.mxu0 0.0
    %896 = vmatpush1.xpose.msra.mxu0 0.0
    %897 = vmatprep.mubr.f32.mxu0 0.0
    %898 = vmatmul.mubr.f32.gmra.mrb[0].mxu0 %v829
    %v899 = vpop.f32.mrb[0].mxu0
    %v900 = vadd.f32 0.0, %v899
    %v901 = vpop.f32.mrb[0].mxu0
    %902 = vdwg.mxu0
    %v903 = vmul.f32 %v900, 0.25
    %905 = vrot.lane.b32.xlu0 %v903, 24
    %v906 = vpop.permute.xlu0 %905
    %v908 = vmul.f32 %v221, %v906
    %vm909 = vcmask 261312
    %v910 = vsel %vm909, %v908, -inf
    %911 = vmax.xlane.f32.xlu0 %v910
    %v912 = vpop.xlane.xlu0 %911
    %v913 = vsub.f32 %v908, %v912
    %v914 = vmul.f32 %v913, 1.442695
    %v915 = vpow.pop %v914
    %917 = vrot.lane.b32.xlu0 %v915, 104
    %v918 = vpop.permute.xlu0 %917
    %v920 = vsel %vm390, %v918, 0.0
    %921 = vadd.xlane.f32.xlu0 %v920
    %v922 = vpop.xlane.xlu0 %921
    %v923 = vrcp.pop %v922
    %v924 = vmul.f32 %v915, %v923
    %926 = vrot.lane.b32.xlu0 %v924, 104
    %v927 = vpop.permute.xlu0 %926
    %v928 = vsel %vm390, %v927, 0
    %930 = vmatprep.subr.mxu0 0.0
    %931 = vmatpush1.msra.mxu0 %v224
    %932 = vmatprep.subr.mxu0 0.0
    %933 = vmatpush1.msra.mxu0 0.0
    %934 = vmatprep.subr.mxu0 0.0
    %935 = vmatpush1.msra.mxu0 0.0
    %936 = vmatprep.subr.mxu0 0.0
    %937 = vmatpush1.msra.mxu0 0.0
    %938 = vmatprep.subr.mxu0 0.0
    %939 = vmatpush1.msra.mxu0 0.0
    %940 = vmatprep.subr.mxu0 0.0
    %941 = vmatpush1.msra.mxu0 0.0
    %942 = vmatprep.subr.mxu0 0.0
    %943 = vmatpush1.msra.mxu0 0.0
    %944 = vmatprep.subr.mxu0 0.0
    %945 = vmatpush1.msra.mxu0 0.0
    %946 = vmatprep.subr.mxu0 0.0
    %947 = vmatpush1.msra.mxu0 0.0
    %948 = vmatprep.subr.mxu0 0.0
    %949 = vmatpush1.msra.mxu0 0.0
    %950 = vmatprep.subr.mxu0 0.0
    %951 = vmatpush1.msra.mxu0 0.0
    %952 = vmatprep.subr.mxu0 0.0
    %953 = vmatpush1.msra.mxu0 0.0
    %954 = vmatprep.subr.mxu0 0.0
    %955 = vmatpush1.msra.mxu0 0.0
    %956 = vmatprep.subr.mxu0 0.0
    %957 = vmatpush1.msra.mxu0 0.0
    %958 = vmatprep.subr.mxu0 0.0
    %959 = vmatpush1.msra.mxu0 0.0
    %960 = vmatprep.subr.mxu0 0.0
    %961 = vmatpush1.msra.mxu0 0.0
    %962 = vmatprep.subr.mxu0 0.0
    %963 = vmatpush1.msra.mxu0 0.0
    %964 = vmatprep.subr.mxu0 0.0
    %965 = vmatpush1.msra.mxu0 0.0
    %966 = vmatprep.subr.mxu0 0.0
    %967 = vmatpush1.msra.mxu0 0.0
    %968 = vmatprep.subr.mxu0 0.0
    %969 = vmatpush1.msra.mxu0 0.0
    %970 = vmatprep.subr.mxu0 0.0
    %971 = vmatpush1.msra.mxu0 0.0
    %972 = vmatprep.subr.mxu0 0.0
    %973 = vmatpush1.msra.mxu0 0.0
    %974 = vmatprep.subr.mxu0 0.0
    %975 = vmatpush1.msra.mxu0 0.0
    %976 = vmatprep.subr.mxu0 0.0
    %977 = vmatpush1.msra.mxu0 0.0
    %978 = vmatprep.subr.mxu0 0.0
    %979 = vmatpush1.msra.mxu0 0.0
    %980 = vmatprep.subr.mxu0 0.0
    %981 = vmatpush1.msra.mxu0 0.0
    %982 = vmatprep.subr.mxu0 0.0
    %983 = vmatpush1.msra.mxu0 0.0
    %984 = vmatprep.subr.mxu0 0.0
    %985 = vmatpush1.msra.mxu0 0.0
    %986 = vmatprep.subr.mxu0 0.0
    %987 = vmatpush1.msra.mxu0 0.0
    %988 = vmatprep.subr.mxu0 0.0
    %989 = vmatpush1.msra.mxu0 0.0
    %990 = vmatprep.subr.mxu0 0.0
    %991 = vmatpush1.msra.mxu0 0.0
    %992 = vmatprep.subr.mxu0 0.0
    %993 = vmatpush1.msra.mxu0 0.0
    %994 = vmatprep.mubr.f32.mxu0 0.0
    %995 = vmatmul.mubr.f32.gmra.mrb[0].mxu0 %v928
    %v996 = vpop.f32.mrb[0].mxu0
    %v997 = vadd.f32 0.0, %v996
    %v998 = vpop.f32.mrb[0].mxu0
    %999 = vdwg.mxu0
    %1001 = vrot.lane.b32.xlu0 %v647, 32
    %v1002 = vpop.permute.xlu0 %1001
    %1005 = vrot.lane.b32.xlu0 %v822, 64
    %v1006 = vpop.permute.xlu0 %1005
    %1009 = vrot.lane.b32.xlu0 %v997, 96
    %v1010 = vpop.permute.xlu0 %1009
    %v1012 = vsel %vm236, %v472, %v1002
    %vm1013 = vcmask 523264
    %v1014 = vsel %vm1013, %v1012, %v1006
    %vm1015 = vcmask 785408
    %v1016 = vsel %vm1015, %v1014, %v1010
    %v1017 = vld [vmem:[%s8] sm:$0xff]
    %v1018 = vld [vmem:[%s8 + $0x8] sm:$0xff]
    %v1019 = vld [vmem:[%s8 + $0x10] sm:$0xff]
    %v1020 = vld [vmem:[%s8 + $0x18] sm:$0xff]
    %v1021 = vld [vmem:[%s8 + $0x20] sm:$0xff]
    %v1022 = vld [vmem:[%s8 + $0x28] sm:$0xff]
    %v1023 = vld [vmem:[%s8 + $0x30] sm:$0xff]
    %v1024 = vld [vmem:[%s8 + $0x38] sm:$0xff]
    %v1025 = vld [vmem:[%s8 + $0x40] sm:$0xff]
    %v1026 = vld [vmem:[%s8 + $0x48] sm:$0xff]
    %v1027 = vld [vmem:[%s8 + $0x50] sm:$0xff]
    %v1028 = vld [vmem:[%s8 + $0x58] sm:$0xff]
    %v1029 = vld [vmem:[%s8 + $0x60] sm:$0xff]
    %v1030 = vld [vmem:[%s8 + $0x68] sm:$0xff]
    %v1031 = vld [vmem:[%s8 + $0x70] sm:$0xff]
    %v1032 = vld [vmem:[%s8 + $0x78] sm:$0xff]
    %v1033 = vld [vmem:[%s9] sm:$0x1]
    %v1035 = vlaneseq
    %v1036 = vshrl.u32 %v1035, 7
    %v1037 = vsub.s32 0, %v1036
    %v1038 = vrot.slane %v1033, %v1037
    %1040 = vmatprep.subr.mxu0 0.0
    %1041 = vmatpush1.msra.mxu0 %v1017
    %1042 = vmatprep.subr.mxu0 0.0
    %1043 = vmatpush1.msra.mxu0 %v1018
    %1044 = vmatprep.subr.mxu0 0.0
    %1045 = vmatpush1.msra.mxu0 %v1019
    %1046 = vmatprep.subr.mxu0 0.0
    %1047 = vmatpush1.msra.mxu0 %v1020
    %1048 = vmatprep.subr.mxu0 0.0
    %1049 = vmatpush1.msra.mxu0 %v1021
    %1050 = vmatprep.subr.mxu0 0.0
    %1051 = vmatpush1.msra.mxu0 %v1022
    %1052 = vmatprep.subr.mxu0 0.0
    %1053 = vmatpush1.msra.mxu0 %v1023
    %1054 = vmatprep.subr.mxu0 0.0
    %1055 = vmatpush1.msra.mxu0 %v1024
    %1056 = vmatprep.subr.mxu0 0.0
    %1057 = vmatpush1.msra.mxu0 %v1025
    %1058 = vmatprep.subr.mxu0 0.0
    %1059 = vmatpush1.msra.mxu0 %v1026
    %1060 = vmatprep.subr.mxu0 0.0
    %1061 = vmatpush1.msra.mxu0 %v1027
    %1062 = vmatprep.subr.mxu0 0.0
    %1063 = vmatpush1.msra.mxu0 %v1028
    %1064 = vmatprep.subr.mxu0 0.0
    %1065 = vmatpush1.msra.mxu0 %v1029
    %1066 = vmatprep.subr.mxu0 0.0
    %1067 = vmatpush1.msra.mxu0 %v1030
    %1068 = vmatprep.subr.mxu0 0.0
    %1069 = vmatpush1.msra.mxu0 %v1031
    %1070 = vmatprep.subr.mxu0 0.0
    %1071 = vmatpush1.msra.mxu0 %v1032
    %1072 = vmatprep.subr.mxu0 0.0
    %1073 = vmatpush1.msra.mxu0 0.0
    %1074 = vmatprep.subr.mxu0 0.0
    %1075 = vmatpush1.msra.mxu0 0.0
    %1076 = vmatprep.subr.mxu0 0.0
    %1077 = vmatpush1.msra.mxu0 0.0
    %1078 = vmatprep.subr.mxu0 0.0
    %1079 = vmatpush1.msra.mxu0 0.0
    %1080 = vmatprep.subr.mxu0 0.0
    %1081 = vmatpush1.msra.mxu0 0.0
    %1082 = vmatprep.subr.mxu0 0.0
    %1083 = vmatpush1.msra.mxu0 0.0
    %1084 = vmatprep.subr.mxu0 0.0
    %1085 = vmatpush1.msra.mxu0 0.0
    %1086 = vmatprep.subr.mxu0 0.0
    %1087 = vmatpush1.msra.mxu0 0.0
    %1088 = vmatprep.subr.mxu0 0.0
    %1089 = vmatpush1.msra.mxu0 0.0
    %1090 = vmatprep.subr.mxu0 0.0
    %1091 = vmatpush1.msra.mxu0 0.0
    %1092 = vmatprep.subr.mxu0 0.0
    %1093 = vmatpush1.msra.mxu0 0.0
    %1094 = vmatprep.subr.mxu0 0.0
    %1095 = vmatpush1.msra.mxu0 0.0
    %1096 = vmatprep.subr.mxu0 0.0
    %1097 = vmatpush1.msra.mxu0 0.0
    %1098 = vmatprep.subr.mxu0 0.0
    %1099 = vmatpush1.msra.mxu0 0.0
    %1100 = vmatprep.subr.mxu0 0.0
    %1101 = vmatpush1.msra.mxu0 0.0
    %1102 = vmatprep.subr.mxu0 0.0
    %1103 = vmatpush1.msra.mxu0 0.0
    %1104 = vmatprep.mubr.f32.mxu0 0.0
    %1105 = vmatmul.mubr.f32.gmra.mrb[0].mxu0 %v1016
    %v1106 = vpop.f32.mrb[0].mxu0
    %v1107 = vadd.f32 %v1038, %v1106
    %v1108 = vpop.f32.mrb[0].mxu0
    %1109 = vdwg.mxu0
    %1110 = vst.msk [vmem:[#allocation2] sm:$0xff] %vm1013, %v1107
    // Predicated region
    $region42: #{tpu_custom_call.1} parent=1 // pred_check
      _
    $region43: #{tpu_custom_call.1} parent=1 // pred_check_branch
      %1112 = sbr.rel (0) target = $region45
    $region44: #{tpu_custom_call.1} parent=1 // pred_region
      %s1114 = ssub.s32 128, 128
      %1115 = vsyncadd [#allocation3], %s1114
      %s1117 = sshll.u32 [#allocation2], 4
      %s1118 = int_to_ptr.vmem [resolvable:$true] %s1117
      %1120 = dma.vmem_to_hbm [thread:$0]  %s1118, 128, %s10, [#allocation3]
    $region45: #{tpu_custom_call.1} parent=1 // pred_fallthru
      _
    // Predicated region
    $region46: #{tpu_custom_call.1} parent=1 // pred_check
      _
    $region47: #{tpu_custom_call.1} parent=1 // pred_check_branch
      %1122 = sbr.rel (0) target = $region49
    $region48: #{tpu_custom_call.1} parent=1 // pred_region
      %1123 = dma.done [#allocation3], 128
    $region49: #{tpu_custom_call.1} parent=1 // pred_fallthru
      _
    %1124 = vsyncpa [#allocation3], 1

</llo_original>
